<compile_context>
chip_gen: v7x
topology: tpu7x:2x2x1
jax: 0.10.0
libtpu: 0.0.40
codegen_flags: <defaults>
</compile_context>

<pallas_src>
import jax
import jax.numpy as jnp
from jax.experimental import pallas as pl
from jax.experimental.pallas import tpu as pltpu

_TARGET_BLOCK_BYTES = 2 * 1024 * 1024  # ~2 MiB/block -> ~8 MiB pipelined VMEM
_MAX_LANE_TILE = 2048                  # keep output lane tiles wide, 128-aligned


def _round_up(v: int, m: int) -> int:
    return ((v + m - 1) // m) * m


def _row_tile(r: int, max_rows: int) -> int:
    """Row (sublane) tile: full dim if it fits, else a multiple of 8."""
    if max_rows >= r:
        return r
    return max(8, (max_rows // 8) * 8)


def _chomp_copy_kernel(x_ref, o_ref):
    w = o_ref.shape[-1]
    if x_ref.shape[-1] == w:
        # Bulk tiled path: input/output blocks are identical -> straight copy.
        o_ref[...] = x_ref[...]
    else:
        # Small-L path: input block carries the full time axis; keep the first
        # L_out columns (static slice).
        o_ref[...] = x_ref[:, :w]


def chomp1d(x: jax.Array, chomp_size: int) -> jax.Array:
    """Equivalent of Chomp1d(chomp_size).forward(x) for x of shape (N, C, L)."""
    n, c, l = x.shape
    assert 0 < chomp_size < l, "chomp_size must be in (0, L)"
    l_out = l - chomp_size

    r = n * c
    x2 = x.reshape(r, l)  # free: contiguous (N, C, L) -> (N*C, L)

    itemsize = jnp.dtype(x.dtype).itemsize
    target_elems = max(1, _TARGET_BLOCK_BYTES // itemsize)

    cost = pl.CostEstimate(
        flops=0,
        transcendentals=0,
        bytes_accessed=2 * r * l_out * itemsize,
    )

    if l_out >= 128:
        # Lane tile: large multiple of 128 (lane-dense stores), capped.
        tl = min(_round_up(l_out, 128), _MAX_LANE_TILE)
        # Row tile from the bytes target (dtype-aware).
        tr = _row_tile(r, target_elems // tl)
        # Megacore (v7x): guarantee >= 2 blocks along a "parallel" axis.
        if pl.cdiv(r, tr) == 1 and pl.cdiv(l_out, tl) == 1:
            if r > 8:
                tr = max(8, _round_up(pl.cdiv(r, 2), 8))
            elif l_out > 128:
                tl = max(128, _round_up(pl.cdiv(l_out, 2), 128))
        grid = (pl.cdiv(r, tr), pl.cdiv(l_out, tl))
        in_spec = pl.BlockSpec((tr, tl), lambda i, j: (i, j))
        out_spec = pl.BlockSpec((tr, tl), lambda i, j: (i, j))
        dim_sem = ("parallel", "parallel")
    else:
        # Whole time axis per block (full-dim last dims are always legal);
        # row tile from the same bytes target so big N*C stays DMA-bound.
        tr = _row_tile(r, target_elems // l)
        if pl.cdiv(r, tr) == 1 and r > 8:
            tr = max(8, _round_up(pl.cdiv(r, 2), 8))
        grid = (pl.cdiv(r, tr),)
        in_spec = pl.BlockSpec((tr, l), lambda i: (i, 0))
        out_spec = pl.BlockSpec((tr, l_out), lambda i: (i, 0))
        dim_sem = ("parallel",)

    out2 = pl.pallas_call(
        _chomp_copy_kernel,
        out_shape=jax.ShapeDtypeStruct((r, l_out), x.dtype),
        grid=grid,
        in_specs=[in_spec],
        out_specs=out_spec,
        compiler_params=pltpu.CompilerParams(dimension_semantics=dim_sem),
        cost_estimate=cost,
    )(x2)

    return out2.reshape(n, c, l_out)


if __name__ == "__main__":
    key = jax.random.PRNGKey(0)

    # 1) Small path (L_out < 128), conv1d NCL layout, f32.
    N, C, L = 2, 4, 16
    chomp_size = 3
    x = jax.random.normal(key, (N, C, L), dtype=jnp.float32)
    out = jax.block_until_ready(chomp1d(x, chomp_size))
    ref = x[:, :, :-chomp_size]
    assert out.shape == (N, C, L - chomp_size), out.shape
    assert jnp.array_equal(out, ref), "mismatch vs reference slice (small path)"

    # 2) Bulk path, bf16, masked partial lane tile + megacore row split.
    N2, C2, L2, chomp2 = 2, 8, 384, 5
    x_big = jax.random.normal(jax.random.PRNGKey(0), (N2, C2, L2), dtype=jnp.bfloat16)
    out_big = jax.block_until_ready(chomp1d(x_big, chomp2))
    ref_big = x_big[:, :, :-chomp2]
    assert out_big.shape == (N2, C2, L2 - chomp2), out_big.shape
    assert jnp.array_equal(out_big, ref_big), "mismatch vs reference slice (bulk path)"

    # 3) Bulk path, f32, few rows -> megacore lane split with a masked tail.
    N3, C3, L3, chomp3 = 1, 4, 300, 4
    x_mid = jax.random.normal(jax.random.PRNGKey(0), (N3, C3, L3), dtype=jnp.float32)
    out_mid = jax.block_until_ready(chomp1d(x_mid, chomp3))
    ref_mid = x_mid[:, :, :-chomp3]
    assert out_mid.shape == (N3, C3, L3 - chomp3), out_mid.shape
    assert jnp.array_equal(out_mid, ref_mid), "mismatch vs reference slice (lane split)"

    print("KERNEL_OK")
</pallas_src>

<mosaic_0001>
module attributes {stable_mosaic.version = 11 : i64} {
  func.func @_chomp_copy_kernel(%arg0: i32, %arg1: memref<8x16xf32, #tpu.memory_space<vmem>>, %arg2: memref<8x13xf32, #tpu.memory_space<vmem>>) attributes {dimension_semantics = [#tpu.dimension_semantics<parallel>], iteration_bounds = array<i64: 1>, scalar_prefetch = 0 : i64, scratch_operands = 0 : i64, tpu.core_type = #tpu.core_type<tc>, window_params = [{transform_indices = @transform_0, window_bounds = array<i64: 8, 16>}, {transform_indices = @transform_1, window_bounds = array<i64: 8, 13>}]} {
    %c0 = arith.constant 0 : index
    %c0_0 = arith.constant 0 : index
    %0 = vector.load %arg1[%c0, %c0_0] : memref<8x16xf32, #tpu.memory_space<vmem>>, vector<8x13xf32>
    %c0_1 = arith.constant 0 : index
    %c0_2 = arith.constant 0 : index
    %1 = vector.load %arg2[%c0_1, %c0_2] : memref<8x13xf32, #tpu.memory_space<vmem>>, vector<8x13xf32>
    tpu.vector_store %arg2[%c0_1, %c0_2], %0 {strides = array<i32>} : memref<8x13xf32, #tpu.memory_space<vmem>>, vector<8x13xf32>,
    return
  }
  func.func @transform_0(%arg0: i32) -> (i32, i32) {
    %c0_i32 = arith.constant 0 : i32
    %c0_i32_0 = arith.constant 0 : i32
    return %arg0, %c0_i32 : i32, i32
  }
  func.func @transform_1(%arg0: i32) -> (i32, i32) {
    %c0_i32 = arith.constant 0 : i32
    %c0_i32_0 = arith.constant 0 : i32
    return %arg0, %c0_i32 : i32, i32
  }
}

</mosaic_0001>

<llo_original>
// kernel: tpu_custom_call.1
$region0: #{tpu_custom_call.1}
  #allocation0 [shape = 'u32[]', space=smem, size = 0x4, offset = 0x4, fixed_abs, tag = 'smem constant byte address 0x4 - core index']
  #allocation1 [shape = 'u32[144,128]{1,0:T(1,128)}', space=vmem, size = 0x12000, scoped, tag = 'internal scratch']
  %s0 = inlined_call_operand.hbm [shape: f32[8,16], index: 0, kind: input, shape index: {}]
  %s1 = inlined_call_operand.hbm [shape: f32[8,13], index: 1, kind: output, shape index: {}]
  %s2 = sld [smem:[#allocation0]]
  $region18: #{tpu_custom_call.1} parent=0
    _
  %s4 = ssub.s32 1, %s2
  %s5 = scalar_select 0, %s4, %s2
  $region1: #{tpu_custom_call.1} parent=0
    #allocation2 [shape = 'u8[4096]{0}', space=vmem, size = 0x1000, scoped, tag = 'input window, operand 0, single buffered']
    #allocation3 [shape = 's32[1]{0}', space=sflag, size = 0x4, scoped, tag = 'scoped memory for tpu_custom_call.1']
    #allocation4 [shape = 's32[1]{0}', space=sflag, size = 0x4, scoped, tag = 'scoped memory for tpu_custom_call.1']
    #allocation5 [shape = 'u8[4096]{0}', space=vmem, size = 0x1000, scoped, tag = 'output window, operand 0, single buffered']
    %6 = vsyncpa [#allocation3], 0
    %7 = vsyncpa [#allocation4], 0
    // Predicated region
    $region2: #{tpu_custom_call.1} parent=1 // pred_check
      _
    $region3: #{tpu_custom_call.1} parent=1 // pred_check_branch
      %9 = sbr.rel (0) target = $region5
    $region4: #{tpu_custom_call.1} parent=1 // pred_region
      %s11 = ssub.s32 128, 128
      %12 = vsyncadd [#allocation3], %s11
      %s14 = sshll.u32 [#allocation2], 4
      %s15 = int_to_ptr.vmem [resolvable:$true] %s14
      %17 = dma.hbm_to_vmem [thread:$0]  %s0, 128, %s15, [#allocation3]
    $region5: #{tpu_custom_call.1} parent=1 // pred_fallthru
      _
    // Predicated region
    $region6: #{tpu_custom_call.1} parent=1 // pred_check
      _
    $region7: #{tpu_custom_call.1} parent=1 // pred_check_branch
      %19 = sbr.rel (0) target = $region9
    $region8: #{tpu_custom_call.1} parent=1 // pred_region
      %20 = dma.done [#allocation3], 128
    $region9: #{tpu_custom_call.1} parent=1 // pred_fallthru
      _
    %v21 = vld [vmem:[#allocation2] sm:$0xff]
    %vm22 = vcmask 105472
    %23 = vst.msk [vmem:[#allocation5] sm:$0xff] %vm22, %v21
    // Predicated region
    $region10: #{tpu_custom_call.1} parent=1 // pred_check
      _
    $region11: #{tpu_custom_call.1} parent=1 // pred_check_branch
      %25 = sbr.rel (0) target = $region13
    $region12: #{tpu_custom_call.1} parent=1 // pred_region
      %s27 = ssub.s32 128, 128
      %28 = vsyncadd [#allocation4], %s27
      %s30 = sshll.u32 [#allocation5], 4
      %s31 = int_to_ptr.vmem [resolvable:$true] %s30
      %33 = dma.vmem_to_hbm [thread:$0]  %s31, 128, %s1, [#allocation4]
    $region13: #{tpu_custom_call.1} parent=1 // pred_fallthru
      _
    // Predicated region
    $region14: #{tpu_custom_call.1} parent=1 // pred_check
      _
    $region15: #{tpu_custom_call.1} parent=1 // pred_check_branch
      %35 = sbr.rel (0) target = $region17
    $region16: #{tpu_custom_call.1} parent=1 // pred_region
      %36 = dma.done [#allocation4], 128
    $region17: #{tpu_custom_call.1} parent=1 // pred_fallthru
      _
    %37 = vsyncpa [#allocation3], 1
    %38 = vsyncpa [#allocation4], 1

</llo_original>
